<compile_context>
chip_gen: v5e
topology: v5e:2x2
jax: 0.10.0
libtpu: 0.0.40
codegen_flags: <defaults>
</compile_context>

<pallas_src>
import functools

import jax
import jax.numpy as jnp
from jax import lax
from jax.experimental import pallas as pl
from jax.experimental.pallas import tpu as pltpu

EPS = 1e-5
_LANE = 128
_TILE_BYTE_BUDGET = 12 * 1024 * 1024   # per-grid-step streaming + temporary VMEM budget
_VMEM_LIMIT_BYTES = 48 * 1024 * 1024   # fits v7x's 64 MiB physical VMEM; ample on v5e/v6e


def _pick_tile(T, bytes_per_col, prefer_even_split):
    """Largest legal T-tile (multiple-of-128 divisor of T, or T itself) within the VMEM budget."""
    cands = {T}
    d = _LANE
    while d <= T:
        if T % d == 0:
            cands.add(d)
        d += _LANE
    cands = sorted(cands)
    fits = [c for c in cands if c * bytes_per_col <= _TILE_BYTE_BUDGET]
    if not fits:
        # TODO(synk): for huge T with no small lane-aligned divisor, switch to a cdiv grid
        # with a masked tail instead of one oversized block.
        return cands[0]
    if prefer_even_split:
        # B == 1: prefer a tile that yields an even number of T-tiles so a second parallel
        # grid axis can feed both v7x TensorCores in the stats-bearing passes.
        even = [c for c in fits if (T // c) >= 2 and (T // c) % 2 == 0]
        if even:
            return even[-1]
    return fits[-1]


def _compiler_params(sem):
    return pltpu.CompilerParams(
        dimension_semantics=sem,
        vmem_limit_bytes=_VMEM_LIMIT_BYTES,
    )


# ---------------------------------------------------------------------------
# Pass 1: per-channel sum / sum-of-squares of x, accumulated over T tiles.
# Grid (B, t_split, nT_h): (b, h) parallel, t is the reduction axis.
# Cross-lane reduce rides the (idle) MXU: (C, tT) @ (tT, 1) ones column.
# ---------------------------------------------------------------------------
def _stats_kernel(x_ref, sum_ref, sq_ref):
    @pl.when(pl.program_id(2) == 0)
    def _():
        sum_ref[...] = jnp.zeros_like(sum_ref)
        sq_ref[...] = jnp.zeros_like(sq_ref)

    x = x_ref[0].astype(jnp.float32)                              # (Cin, tT)
    ones = jnp.ones((x.shape[1], 1), jnp.float32)
    sum_ref[...] += jnp.dot(x, ones, preferred_element_type=jnp.float32)[None, None]
    sq_ref[...] += jnp.dot(x * x, ones, preferred_element_type=jnp.float32)[None, None]


# ---------------------------------------------------------------------------
# Pass 2: net = fc_0(relu(bn_0(x))), fused with per-channel stats of net.
# ---------------------------------------------------------------------------
def _fc0_kernel(x_ref, scale0_ref, shift0_ref, w0_ref, b0_ref,
                net_ref, sum_ref, sq_ref):
    @pl.when(pl.program_id(2) == 0)
    def _():
        sum_ref[...] = jnp.zeros_like(sum_ref)
        sq_ref[...] = jnp.zeros_like(sq_ref)

    x = x_ref[0].astype(jnp.float32)                              # (Cin, tT)
    h = jnp.maximum(scale0_ref[0] * x + shift0_ref[0], 0.0)       # bn_0 + ReLU
    net = jnp.dot(w0_ref[...].astype(jnp.float32), h,
                  preferred_element_type=jnp.float32) + b0_ref[...]   # (Ch, tT)
    net_ref[...] = net[None].astype(net_ref.dtype)
    ones = jnp.ones((net.shape[1], 1), jnp.float32)
    sum_ref[...] += jnp.dot(net, ones, preferred_element_type=jnp.float32)[None, None]
    sq_ref[...] += jnp.dot(net * net, ones, preferred_element_type=jnp.float32)[None, None]


# ---------------------------------------------------------------------------
# Pass 3: out = shortcut(x) + fc_1(relu(bn_1(net))).  Fully parallel grid.
# ---------------------------------------------------------------------------
def _fc1_kernel(*refs, use_shortcut):
    if use_shortcut:
        (x_ref, net_ref, scale1_ref, shift1_ref, w1_ref, b1_ref, wsc_ref, o_ref) = refs
    else:
        (x_ref, net_ref, scale1_ref, shift1_ref, w1_ref, b1_ref, o_ref) = refs
        wsc_ref = None

    net = net_ref[0].astype(jnp.float32)                          # (Ch, tT)
    h = jnp.maximum(scale1_ref[0] * net + shift1_ref[0], 0.0)     # bn_1 + ReLU
    dx = jnp.dot(w1_ref[...].astype(jnp.float32), h,
                 preferred_element_type=jnp.float32) + b1_ref[...]    # (Cout, tT)
    x = x_ref[0].astype(jnp.float32)                              # (Cin, tT)
    if use_shortcut:
        x_s = jnp.dot(wsc_ref[...].astype(jnp.float32), x,
                      preferred_element_type=jnp.float32)
    else:
        x_s = x
    o_ref[...] = (x_s + dx)[None].astype(o_ref.dtype)


def cresnet_block_conv1d(x, c, params):
    """Forward pass. x: (B, size_in, T) NCW, c: (B, c_dim). Returns (B, size_out, T)."""
    B, size_in, T = x.shape
    size_h = params["w_fc0"].shape[0]
    size_out = params["w_fc1"].shape[0]
    use_shortcut = "w_sc" in params
    f32 = jnp.float32

    x_item = jnp.dtype(x.dtype).itemsize
    net_dtype = x.dtype                      # bf16 in -> bf16 net; stats stay f32 in-kernel
    net_item = jnp.dtype(net_dtype).itemsize
    out_item = x_item

    # VMEM bytes per T-column in the heaviest pass: double-buffered streams (x, net, out)
    # plus the f32 working copies held for one grid step.
    bytes_per_col = (2 * (size_in * x_item + size_h * net_item + size_out * out_item)
                     + 4 * (size_in + 2 * size_h + size_out))
    tT = _pick_tile(T, bytes_per_col, prefer_even_split=(B == 1))
    nT = T // tT
    t_split = 2 if (B == 1 and nT >= 2 and nT % 2 == 0) else 1
    nT_h = nT // t_split
    grid = (B, t_split, nT_h)
    N = B * T

    # Conditional gamma/beta depend only on c -> hoisted out of the per-tile path (tiny XLA).
    cf = c.astype(f32)
    gamma0 = cf @ params["wg0"].T.astype(f32) + params["bg0"].astype(f32)   # (B, Cin)
    beta0 = cf @ params["wb0"].T.astype(f32) + params["bb0"].astype(f32)
    gamma1 = cf @ params["wg1"].T.astype(f32) + params["bg1"].astype(f32)   # (B, Ch)
    beta1 = cf @ params["wb1"].T.astype(f32) + params["bb1"].astype(f32)

    x_spec = pl.BlockSpec((1, size_in, tT), lambda b, h, t: (b, 0, h * nT_h + t))
    net_spec = pl.BlockSpec((1, size_h, tT), lambda b, h, t: (b, 0, h * nT_h + t))

    # ---- pass 1: global batch statistics of x (per input channel) --------------------
    sum_x, sq_x = pl.pallas_call(
        _stats_kernel,
        grid=grid,
        in_specs=[x_spec],
        out_specs=[
            pl.BlockSpec((1, 1, size_in, 1), lambda b, h, t: (b, h, 0, 0)),
            pl.BlockSpec((1, 1, size_in, 1), lambda b, h, t: (b, h, 0, 0)),
        ],
        out_shape=[
            jax.ShapeDtypeStruct((B, t_split, size_in, 1), f32),
            jax.ShapeDtypeStruct((B, t_split, size_in, 1), f32),
        ],
        compiler_params=_compiler_params(("parallel", "parallel", "arbitrary")),
    )(x)

    mean0 = jnp.sum(sum_x[..., 0], axis=(0, 1)) / N
    var0 = jnp.maximum(jnp.sum(sq_x[..., 0], axis=(0, 1)) / N - mean0 * mean0, 0.0)
    rstd0 = lax.rsqrt(var0 + EPS)
    scale0 = (gamma0 * rstd0[None])[:, :, None]                       # (B, Cin, 1)
    shift0 = beta0[:, :, None] - scale0 * mean0[None, :, None]        # (B, Cin, 1)

    # ---- pass 2: net = fc_0(relu(bn_0(x))) + stats of net ----------------------------
    net, sum_n, sq_n = pl.pallas_call(
        _fc0_kernel,
        grid=grid,
        in_specs=[
            x_spec,
            pl.BlockSpec((1, size_in, 1), lambda b, h, t: (b, 0, 0)),
            pl.BlockSpec((1, size_in, 1), lambda b, h, t: (b, 0, 0)),
            pl.BlockSpec((size_h, size_in), lambda b, h, t: (0, 0)),
            pl.BlockSpec((size_h, 1), lambda b, h, t: (0, 0)),
        ],
        out_specs=[
            net_spec,
            pl.BlockSpec((1, 1, size_h, 1), lambda b, h, t: (b, h, 0, 0)),
            pl.BlockSpec((1, 1, size_h, 1), lambda b, h, t: (b, h, 0, 0)),
        ],
        out_shape=[
            jax.ShapeDtypeStruct((B, size_h, T), net_dtype),
            jax.ShapeDtypeStruct((B, t_split, size_h, 1), f32),
            jax.ShapeDtypeStruct((B, t_split, size_h, 1), f32),
        ],
        compiler_params=_compiler_params(("parallel", "parallel", "arbitrary")),
    )(x, scale0, shift0,
      params["w_fc0"],
      params["b_fc0"].astype(f32).reshape(size_h, 1))

    mean1 = jnp.sum(sum_n[..., 0], axis=(0, 1)) / N
    var1 = jnp.maximum(jnp.sum(sq_n[..., 0], axis=(0, 1)) / N - mean1 * mean1, 0.0)
    rstd1 = lax.rsqrt(var1 + EPS)
    scale1 = (gamma1 * rstd1[None])[:, :, None]                       # (B, Ch, 1)
    shift1 = beta1[:, :, None] - scale1 * mean1[None, :, None]        # (B, Ch, 1)

    # ---- pass 3: out = shortcut(x) + fc_1(relu(bn_1(net))) ---------------------------
    inputs = [x, net, scale1, shift1,
              params["w_fc1"],
              params["b_fc1"].astype(f32).reshape(size_out, 1)]
    in_specs = [
        x_spec,
        net_spec,
        pl.BlockSpec((1, size_h, 1), lambda b, h, t: (b, 0, 0)),
        pl.BlockSpec((1, size_h, 1), lambda b, h, t: (b, 0, 0)),
        pl.BlockSpec((size_out, size_h), lambda b, h, t: (0, 0)),
        pl.BlockSpec((size_out, 1), lambda b, h, t: (0, 0)),
    ]
    if use_shortcut:
        inputs.append(params["w_sc"])
        in_specs.append(pl.BlockSpec((size_out, size_in), lambda b, h, t: (0, 0)))

    out = pl.pallas_call(
        functools.partial(_fc1_kernel, use_shortcut=use_shortcut),
        grid=grid,
        in_specs=in_specs,
        out_specs=pl.BlockSpec((1, size_out, tT), lambda b, h, t: (b, 0, h * nT_h + t)),
        out_shape=jax.ShapeDtypeStruct((B, size_out, T), x.dtype),
        compiler_params=_compiler_params(("parallel", "parallel", "parallel")),
    )(*inputs)
    return out


def reference_forward(x_ncw, c, params):
    """Pure-JAX mirror of the PyTorch module (NCW layout, training-mode BN)."""
    def conv1x1_ncw(x, w, b=None):
        y = jnp.einsum("oi,bit->bot", w, x)
        if b is not None:
            y = y + b[None, :, None]
        return y

    def cbn(x, wg, bg, wb, bb):
        gamma = (c @ wg.T + bg)[:, :, None]
        beta = (c @ wb.T + bb)[:, :, None]
        mean = x.mean(axis=(0, 2), keepdims=True)
        var = ((x - mean) ** 2).mean(axis=(0, 2), keepdims=True)
        xhat = (x - mean) / jnp.sqrt(var + EPS)
        return gamma * xhat + beta

    net = conv1x1_ncw(jnp.maximum(cbn(x_ncw, params["wg0"], params["bg0"],
                                      params["wb0"], params["bb0"]), 0.0),
                      params["w_fc0"], params["b_fc0"])
    dx = conv1x1_ncw(jnp.maximum(cbn(net, params["wg1"], params["bg1"],
                                     params["wb1"], params["bb1"]), 0.0),
                     params["w_fc1"], params["b_fc1"])
    x_s = conv1x1_ncw(x_ncw, params["w_sc"]) if "w_sc" in params else x_ncw
    return x_s + dx


if __name__ == "__main__":
    key = jax.random.PRNGKey(0)

    def make_params(k, c_dim, size_in, size_h, size_out):
        ks = jax.random.split(k, 13)

        def rnd(kk, shape):
            return jax.random.normal(kk, shape, dtype=jnp.float32) * 0.1

        p = {
            "wg0": rnd(ks[0], (size_in, c_dim)),  "bg0": rnd(ks[1], (size_in,)),
            "wb0": rnd(ks[2], (size_in, c_dim)),  "bb0": rnd(ks[3], (size_in,)),
            "wg1": rnd(ks[4], (size_h, c_dim)),   "bg1": rnd(ks[5], (size_h,)),
            "wb1": rnd(ks[6], (size_h, c_dim)),   "bb1": rnd(ks[7], (size_h,)),
            "w_fc0": rnd(ks[8], (size_h, size_in)),   "b_fc0": rnd(ks[9], (size_h,)),
            "w_fc1": rnd(ks[10], (size_out, size_h)), "b_fc1": rnd(ks[11], (size_out,)),
        }
        if size_in != size_out:
            p["w_sc"] = rnd(ks[12], (size_out, size_in))
        return p

    def run_case(k, B, T, c_dim, size_in, size_h, size_out):
        kp, kx, kc = jax.random.split(k, 3)
        params = make_params(kp, c_dim, size_in, size_h, size_out)
        x = jax.random.normal(kx, (B, size_in, T), dtype=jnp.float32)
        cc = jax.random.normal(kc, (B, c_dim), dtype=jnp.float32)
        out = jax.block_until_ready(cresnet_block_conv1d(x, cc, params))
        ref = jax.block_until_ready(reference_forward(x, cc, params))
        assert out.shape == (B, size_out, T), out.shape
        if not jnp.allclose(out, ref, atol=2e-4, rtol=2e-4):
            err = float(jnp.max(jnp.abs(out - ref)))
            raise AssertionError(f"Pallas kernel does not match reference, max abs err={err}")

    k1, k2, k3 = jax.random.split(key, 3)
    # Case 1: size_in != size_out -> shortcut conv; T=1024 -> one 1024-wide tile per batch.
    run_case(k1, B=2, T=1024, c_dim=8, size_in=16, size_h=32, size_out=24)
    # Case 2: size_in == size_out -> identity shortcut; T=384 -> one 384-wide tile (was 3x128).
    run_case(k2, B=2, T=384, c_dim=8, size_in=32, size_h=32, size_out=32)
    # Case 3: B=1 -> T split into two parallel halves for the stats passes (dual-TC path).
    run_case(k3, B=1, T=1024, c_dim=6, size_in=24, size_h=40, size_out=24)
    print("KERNEL_OK")
</pallas_src>

<mosaic_0001>
module attributes {stable_mosaic.version = 11 : i64} {
  func.func @_stats_kernel(%arg0: i32, %arg1: i32, %arg2: i32, %arg3: memref<1x16x1024xf32, #tpu.memory_space<vmem>>, %arg4: memref<1x1x16x1xf32, #tpu.memory_space<vmem>>, %arg5: memref<1x1x16x1xf32, #tpu.memory_space<vmem>>) attributes {dimension_semantics = [#tpu.dimension_semantics<parallel>, #tpu.dimension_semantics<parallel>, #tpu.dimension_semantics<arbitrary>], iteration_bounds = array<i64: 2, 1, 1>, scalar_prefetch = 0 : i64, scratch_operands = 0 : i64, tpu.core_type = #tpu.core_type<tc>, window_params = [{transform_indices = @transform_0, window_bounds = array<i64: 1, 16, 1024>}, {transform_indices = @transform_1, window_bounds = array<i64: 1, 1, 16, 1>}, {transform_indices = @transform_2, window_bounds = array<i64: 1, 1, 16, 1>}]} {
    %c0_i32 = arith.constant 0 : i32
    %0 = arith.cmpi eq, %arg2, %c0_i32 : i32
    %1 = arith.extui %0 : i1 to i32
    %c0_i32_0 = arith.constant 0 : i32
    %2 = arith.cmpi ne, %1, %c0_i32_0 : i32
    scf.if %2 {
      %cst_21 = arith.constant 0.000000e+00 : f32
      %17 = vector.broadcast %cst_21 : f32 to vector<1x1x16x1xf32>
      %c0_22 = arith.constant 0 : index
      %c0_23 = arith.constant 0 : index
      %c0_24 = arith.constant 0 : index
      %c0_25 = arith.constant 0 : index
      %18 = vector.load %arg4[%c0_22, %c0_23, %c0_24, %c0_25] : memref<1x1x16x1xf32, #tpu.memory_space<vmem>>, vector<1x1x16x1xf32>
      tpu.vector_store %arg4[%c0_22, %c0_23, %c0_24, %c0_25], %17 {strides = array<i32>} : memref<1x1x16x1xf32, #tpu.memory_space<vmem>>, vector<1x1x16x1xf32>,
      %cst_26 = arith.constant 0.000000e+00 : f32
      %19 = vector.broadcast %cst_26 : f32 to vector<1x1x16x1xf32>
      %c0_27 = arith.constant 0 : index
      %c0_28 = arith.constant 0 : index
      %c0_29 = arith.constant 0 : index
      %c0_30 = arith.constant 0 : index
      %20 = vector.load %arg5[%c0_27, %c0_28, %c0_29, %c0_30] : memref<1x1x16x1xf32, #tpu.memory_space<vmem>>, vector<1x1x16x1xf32>
      tpu.vector_store %arg5[%c0_27, %c0_28, %c0_29, %c0_30], %19 {strides = array<i32>} : memref<1x1x16x1xf32, #tpu.memory_space<vmem>>, vector<1x1x16x1xf32>,
    } else {
    }
    %c0 = arith.constant 0 : index
    %c0_1 = arith.constant 0 : index
    %c0_2 = arith.constant 0 : index
    %3 = vector.load %arg3[%c0, %c0_1, %c0_2] : memref<1x16x1024xf32, #tpu.memory_space<vmem>>, vector<1x16x1024xf32>
    %4 = vector.shape_cast %3 : vector<1x16x1024xf32> to vector<16x1024xf32>
    %cst = arith.constant 1.000000e+00 : f32
    %5 = vector.broadcast %cst : f32 to vector<1024x1xf32>
    %c0_3 = arith.constant 0 : index
    %c0_4 = arith.constant 0 : index
    %c0_5 = arith.constant 0 : index
    %c0_6 = arith.constant 0 : index
    %6 = vector.load %arg4[%c0_3, %c0_4, %c0_5, %c0_6] : memref<1x1x16x1xf32, #tpu.memory_space<vmem>>, vector<1x1x16x1xf32>
    %cst_7 = arith.constant dense<0.000000e+00> : vector<16x1xf32>
    %7 = tpu.matmul %4, %5, %cst_7 {dimension_numbers = #tpu.dot_dimension_numbers<[1], [0], [0], [1], [0, 0, 1, 1], [], []>} : vector<16x1024xf32>, vector<1024x1xf32>, vector<16x1xf32> -> vector<16x1xf32>
    %8 = vector.shape_cast %7 : vector<16x1xf32> to vector<1x1x16x1xf32>
    %9 = arith.addf %6, %8 : vector<1x1x16x1xf32>
    %c0_8 = arith.constant 0 : index
    %c0_9 = arith.constant 0 : index
    %c0_10 = arith.constant 0 : index
    %c0_11 = arith.constant 0 : index
    %10 = vector.load %arg4[%c0_8, %c0_9, %c0_10, %c0_11] : memref<1x1x16x1xf32, #tpu.memory_space<vmem>>, vector<1x1x16x1xf32>
    tpu.vector_store %arg4[%c0_8, %c0_9, %c0_10, %c0_11], %9 {strides = array<i32>} : memref<1x1x16x1xf32, #tpu.memory_space<vmem>>, vector<1x1x16x1xf32>,
    %c0_12 = arith.constant 0 : index
    %c0_13 = arith.constant 0 : index
    %c0_14 = arith.constant 0 : index
    %c0_15 = arith.constant 0 : index
    %11 = vector.load %arg5[%c0_12, %c0_13, %c0_14, %c0_15] : memref<1x1x16x1xf32, #tpu.memory_space<vmem>>, vector<1x1x16x1xf32>
    %12 = arith.mulf %4, %4 : vector<16x1024xf32>
    %cst_16 = arith.constant dense<0.000000e+00> : vector<16x1xf32>
    %13 = tpu.matmul %12, %5, %cst_16 {dimension_numbers = #tpu.dot_dimension_numbers<[1], [0], [0], [1], [0, 0, 1, 1], [], []>} : vector<16x1024xf32>, vector<1024x1xf32>, vector<16x1xf32> -> vector<16x1xf32>
    %14 = vector.shape_cast %13 : vector<16x1xf32> to vector<1x1x16x1xf32>
    %15 = arith.addf %11, %14 : vector<1x1x16x1xf32>
    %c0_17 = arith.constant 0 : index
    %c0_18 = arith.constant 0 : index
    %c0_19 = arith.constant 0 : index
    %c0_20 = arith.constant 0 : index
    %16 = vector.load %arg5[%c0_17, %c0_18, %c0_19, %c0_20] : memref<1x1x16x1xf32, #tpu.memory_space<vmem>>, vector<1x1x16x1xf32>
    tpu.vector_store %arg5[%c0_17, %c0_18, %c0_19, %c0_20], %15 {strides = array<i32>} : memref<1x1x16x1xf32, #tpu.memory_space<vmem>>, vector<1x1x16x1xf32>,
    return
  }
  func.func @transform_0(%arg0: i32, %arg1: i32, %arg2: i32) -> (i32, i32, i32) {
    %c1_i32 = arith.constant 1 : i32
    %0 = arith.muli %arg1, %c1_i32 : i32
    %1 = arith.addi %0, %arg2 : i32
    %c0_i32 = arith.constant 0 : i32
    %c0_i32_0 = arith.constant 0 : i32
    return %arg0, %c0_i32, %1 : i32, i32, i32
  }
  func.func @transform_1(%arg0: i32, %arg1: i32, %arg2: i32) -> (i32, i32, i32, i32) {
    %c0_i32 = arith.constant 0 : i32
    %c0_i32_0 = arith.constant 0 : i32
    %c0_i32_1 = arith.constant 0 : i32
    return %arg0, %arg1, %c0_i32, %c0_i32_0 : i32, i32, i32, i32
  }
  func.func @transform_2(%arg0: i32, %arg1: i32, %arg2: i32) -> (i32, i32, i32, i32) {
    %c0_i32 = arith.constant 0 : i32
    %c0_i32_0 = arith.constant 0 : i32
    %c0_i32_1 = arith.constant 0 : i32
    return %arg0, %arg1, %c0_i32, %c0_i32_0 : i32, i32, i32, i32
  }
}

</mosaic_0001>

<llo_original>
// kernel: tpu_custom_call.1
$region0: #{tpu_custom_call.1}
  #allocation0 [shape = 'u32[]', space=smem, size = 0x4, offset = 0x4, fixed_abs, tag = 'smem constant byte address 0x4 - core index']
  #allocation1 [shape = 'u32[72,128]{1,0:T(1,128)}', space=vmem, size = 0x9000, scoped, tag = 'internal scratch']
  %s0 = inlined_call_operand.hbm [shape: f32[2,16,1024], index: 0, kind: input, shape index: {}]
  %s1 = inlined_call_operand.vmem [shape: f32[2,1,16,1], index: 1, kind: output, shape index: {0}]
  %s2 = inlined_call_operand.vmem [shape: f32[2,1,16,1], index: 2, kind: output, shape index: {1}]
  %3 = xla_tuple %s1, %s2
  %s4 = sld [smem:[#allocation0]]
  $region53: #{tpu_custom_call.1} parent=0
    _
  %s6 = ssub.s32 1, %s4
  %s7 = scalar_select 0, %s6, %s4
  $region1: #{tpu_custom_call.1} parent=0
    #allocation2 [shape = 'u8[131072]{0}', space=vmem, size = 0x20000, scoped, tag = 'input window, operand 0']
    #allocation3 [shape = 's32[2]{0}', space=sflag, size = 0x8, scoped, tag = 'scoped memory for tpu_custom_call.1']
    %8 = vsyncpa [#allocation3], 0
    %s9 = scalar_lea.sflag [#allocation3], 1
    %10 = vsyncpa %s9, 0
    loop: start=0, step=1, limit=4
    $region2: #{tpu_custom_call.1} parent=1 // loop_pre_header
      _
    $region3: #{tpu_custom_call.1} parent=1 // loop_header
      %s12 = sphi 0, %s16
      %p13 = scmp.ge.s32.totalorder %s12, 4
      %s19 = sphi 0, %s38
      %s20 = sphi 0, %s34
      %s21 = sphi 0, %s30
      %s22 = sphi 0, %s19
      %s23 = sphi 0, %s20
      %s24 = sphi 0, %s21
      %s25 = sphi 0, %s22
      %s26 = sphi 0, %s23
      %s27 = sphi 0, %s24
      %s45 = sphi 0, %s47
      %s48 = sphi 0, %s45
      %s49 = sphi 0, %s48
      %s65 = sphi 0, %s49
      %s73 = sphi 0, %s75
      %s76 = sphi 0, %s73
      %s77 = sphi 0, %s76
      %s93 = sphi 0, %s77
      %s101 = sphi 0, %s103
      %s104 = sphi 0, %s101
      %s105 = sphi 0, %s104
      %s121 = sphi 0, %s105
    $region4: #{tpu_custom_call.1} parent=1 // loop_header_branch
      %15 = sbr.rel (%p13) target = $region8
    $region5: #{tpu_custom_call.1} parent=1 // loop_body
      %s17 = ssub.s32 %s12, 1
      %s18 = ssub.s32 %s12, 2
      %s28 = sadd.s32 1, %s21
      %p29 = scmp.ge.s32.totalorder %s28, 1
      %s30 = scalar_select %p29, 0, %s28
      %s31 = sadd.s32 1, %s20
      %s32 = scalar_select %p29, %s31, %s20
      %p33 = scmp.ge.s32.totalorder %s32, 1
      %s34 = scalar_select %p33, 0, %s32
      %s35 = sadd.s32 1, %s19
      %s36 = scalar_select %p33, %s35, %s19
      %p37 = scmp.ge.s32.totalorder %s36, 2
      %s38 = scalar_select %p37, 0, %s36
      %s39 = sadd.s32 %s20, %s21
      %s40 = sadd.s32 %s34, %s30
      %s41 = ssub.s32 %s19, %s38
      %s42 = ssub.s32 %s39, %s40
      %s43 = sor.u32 %s41, %s42
      %p44 = scmp.eq.s32.totalorder %s43, 0
      %s46 = sadd.s32 %s45, 1
      %s47 = scalar_select %p44, %s45, %s46
      %p50 = pneg %p44
      %p51 = scmp.eq.s32.totalorder %s12, 1
      %p52 = por %p50, %p51
      %p53 = scmp.ne.s32.totalorder %s45, %s48
      %p54 = scmp.eq.s32.totalorder %s12, 0
      %p55 = por %p53, %p54
      %p56 = scmp.ne.s32.totalorder %s45, %s48
      %p57 = scmp.eq.s32.totalorder %s17, 1
      %p58 = por %p56, %p57
      %p59 = scmp.ne.s32.totalorder %s48, %s49
      %p60 = scmp.eq.s32.totalorder %s17, 0
      %p61 = por %p59, %p60
      %p62 = scmp.ne.s32.totalorder %s48, %s49
      %p63 = scmp.eq.s32.totalorder %s18, 1
      %p64 = por %p62, %p63
      %p66 = scmp.ne.s32.totalorder %s49, %s65
      %p67 = scmp.eq.s32.totalorder %s18, 0
      %p68 = por %p66, %p67
      %s69 = ssub.s32 %s19, %s38
      %s70 = ssub.s32 %s20, %s34
      %s71 = sor.u32 %s69, %s70
      %p72 = scmp.eq.s32.totalorder %s71, 0
      %s74 = sadd.s32 %s73, 1
      %s75 = scalar_select %p72, %s73, %s74
      %p78 = pneg %p72
      %p79 = scmp.eq.s32.totalorder %s12, 1
      %p80 = por %p78, %p79
      %p81 = scmp.ne.s32.totalorder %s73, %s76
      %p82 = scmp.eq.s32.totalorder %s12, 0
      %p83 = por %p81, %p82
      %p84 = scmp.ne.s32.totalorder %s73, %s76
      %p85 = scmp.eq.s32.totalorder %s17, 1
      %p86 = por %p84, %p85
      %p87 = scmp.ne.s32.totalorder %s76, %s77
      %p88 = scmp.eq.s32.totalorder %s17, 0
      %p89 = por %p87, %p88
      %p90 = scmp.ne.s32.totalorder %s76, %s77
      %p91 = scmp.eq.s32.totalorder %s18, 1
      %p92 = por %p90, %p91
      %p94 = scmp.ne.s32.totalorder %s77, %s93
      %p95 = scmp.eq.s32.totalorder %s18, 0
      %p96 = por %p94, %p95
      %s97 = ssub.s32 %s19, %s38
      %s98 = ssub.s32 %s20, %s34
      %s99 = sor.u32 %s97, %s98
      %p100 = scmp.eq.s32.totalorder %s99, 0
      %s102 = sadd.s32 %s101, 1
      %s103 = scalar_select %p100, %s101, %s102
      %p106 = pneg %p100
      %p107 = scmp.eq.s32.totalorder %s12, 1
      %p108 = por %p106, %p107
      %p109 = scmp.ne.s32.totalorder %s101, %s104
      %p110 = scmp.eq.s32.totalorder %s12, 0
      %p111 = por %p109, %p110
      %p112 = scmp.ne.s32.totalorder %s101, %s104
      %p113 = scmp.eq.s32.totalorder %s17, 1
      %p114 = por %p112, %p113
      %p115 = scmp.ne.s32.totalorder %s104, %s105
      %p116 = scmp.eq.s32.totalorder %s17, 0
      %p117 = por %p115, %p116
      %p118 = scmp.ne.s32.totalorder %s104, %s105
      %p119 = scmp.eq.s32.totalorder %s18, 1
      %p120 = por %p118, %p119
      %p122 = scmp.ne.s32.totalorder %s105, %s121
      %p123 = scmp.eq.s32.totalorder %s18, 0
      %p124 = por %p122, %p123
      %p125 = scmp.le.s32.totalorder 1, %s12
      %p126 = scmp.lt.s32.totalorder %s12, 3
      %p127 = pnand %p125, %p126
      %p128 = pneg %p127
      // Predicated region
      $region9: #{tpu_custom_call.1} parent=5 // pred_check
        _
      $region10: #{tpu_custom_call.1} parent=5 // pred_check_branch
        %130 = sbr.rel (%p127) target = $region12
      $region11: #{tpu_custom_call.1} parent=5 // pred_region
        %s131 = ssub.s32 %s12, 1
      $region12: #{tpu_custom_call.1} parent=5 // pred_fallthru
        _
      %p132 = scmp.lt.s32.totalorder %s12, 2
      // Predicated region
      $region13: #{tpu_custom_call.1} parent=5 // pred_check
        %p133 = pneg %p132
      $region14: #{tpu_custom_call.1} parent=5 // pred_check_branch
        %135 = sbr.rel (%p133) target = $region16
      $region15: #{tpu_custom_call.1} parent=5 // pred_region
        // Predicated region
        $region17: #{tpu_custom_call.1} parent=15 // pred_check
          %p136 = pneg %p55
        $region18: #{tpu_custom_call.1} parent=15 // pred_check_branch
          %138 = sbr.rel (%p136) target = $region20
        $region19: #{tpu_custom_call.1} parent=15 // pred_region
          %s139 = sand.u32 %s45, 1
          %s140 = scalar_lea.sflag [#allocation3], %s139
          %s141 = sand.u32 %s45, 1
          %s142 = smul.addr %s141, 128
          %s143 = scalar_lea.vmem [#allocation2], %s142
          %s144 = sadd.s32 %s20, %s21
          %s145 = smul.u32 8, %s144
          %147 = vsyncadd %s140, 0
          %s148 = smul.addr %s19, 16
          %s149 = sadd.s32 %s145, %s148
          %s150 = smul.addr %s149, 8
          %s151 = scalar_lea.hbm %s0, %s150
          %s152 = sshll.u32 %s151, 4
          %s153 = int_to_ptr.hbm [resolvable:$true] %s152
          %s154 = sshll.u32 %s143, 4
          %s155 = int_to_ptr.vmem [resolvable:$true] %s154
          %160 = dma.hbm_to_vmem [thread:$0]  %s153, 2048, %s155, %s140, 1024, 1024, 64
        $region20: #{tpu_custom_call.1} parent=15 // pred_fallthru
          _
      $region16: #{tpu_custom_call.1} parent=5 // pred_fallthru
        _
      %p161 = scmp.le.s32.totalorder 1, %s12
      %p162 = scmp.lt.s32.totalorder %s12, 3
      %p163 = pnand %p161, %p162
      %p164 = pneg %p163
      // Predicated region
      $region21: #{tpu_custom_call.1} parent=5 // pred_check
        _
      $region22: #{tpu_custom_call.1} parent=5 // pred_check_branch
        %166 = sbr.rel (%p163) target = $region24
      $region23: #{tpu_custom_call.1} parent=5 // pred_region
        %s167 = ssub.s32 %s12, 1
        %s168 = sand.u32 %s48, 1
        %s169 = scalar_lea.sflag [#allocation3], %s168
        %s170 = sand.u32 %s48, 1
        %s171 = smul.addr %s170, 128
        %s172 = scalar_lea.vmem [#allocation2], %s171
        // Predicated region
        $region25: #{tpu_custom_call.1} parent=23 // pred_check
          %p173 = pneg %p61
        $region26: #{tpu_custom_call.1} parent=23 // pred_check_branch
          %175 = sbr.rel (%p173) target = $region28
        $region27: #{tpu_custom_call.1} parent=23 // pred_region
          %177 = dma.done %s169, 2048
        $region28: #{tpu_custom_call.1} parent=23 // pred_fallthru
          _
        %s178 = sand.u32 %s48, 1
        %s179 = scalar_lea.sflag [#allocation3], %s178
        %s180 = sand.u32 %s48, 1
        %s181 = smul.addr %s180, 128
        %s182 = scalar_lea.vmem [#allocation2], %s181
        %p183 = pneg %p61
        %p184 = pneg %p58
        %p185 = pneg %p89
        %p186 = pneg %p86
        %p187 = scmp.lt.s32.totalorder %s22, 1
        %s188 = scalar_select %p187, %s22, 1
        %p189 = scmp.lt.s32.totalorder %s23, 0
        %s190 = scalar_select %p189, %s23, 0
        %s191 = smul.addr %s190, 2
        %s192 = smul.addr %s188, 2
        %s193 = sadd.s32 %s191, %s192
        %s194 = smul.addr %s193, 8
        %s195 = scalar_lea.vmem %s1, %s194
        %p196 = pneg %p117
        %p197 = pneg %p114
        %p198 = scmp.lt.s32.totalorder %s22, 1
        %s199 = scalar_select %p198, %s22, 1
        %p200 = scmp.lt.s32.totalorder %s23, 0
        %s201 = scalar_select %p200, %s23, 0
        %s202 = smul.addr %s201, 2
        %s203 = smul.addr %s199, 2
        %s204 = sadd.s32 %s202, %s203
        %s205 = smul.addr %s204, 8
        %s206 = scalar_lea.vmem %s2, %s205
        %s207 = sadd.s32 %s23, %s24
        %s208 = smul.u32 8, %s207
        %p209 = scmp.lt.s32.totalorder %s22, 1
        %s210 = scalar_select %p209, %s22, 1
        %p211 = scmp.lt.s32.totalorder %s23, 0
        %s212 = scalar_select %p211, %s23, 0
        %s213 = smul.addr %s212, 2
        %s214 = smul.addr %s210, 2
        %s215 = sadd.s32 %s213, %s214
        %s216 = smul.addr %s215, 8
        %s217 = scalar_lea.vmem %s1, %s216
        %p218 = scmp.lt.s32.totalorder %s22, 1
        %s219 = scalar_select %p218, %s22, 1
        %p220 = scmp.lt.s32.totalorder %s23, 0
        %s221 = scalar_select %p220, %s23, 0
        %s222 = smul.addr %s221, 2
        %s223 = smul.addr %s219, 2
        %s224 = sadd.s32 %s222, %s223
        %s225 = smul.addr %s224, 8
        %s226 = scalar_lea.vmem %s2, %s225
        %p227 = scmp.eq.s32.totalorder %s24, 0
        // Predicated region
        $region29: #{tpu_custom_call.1} parent=23 // pred_check
          %p228 = pneg %p227
        $region30: #{tpu_custom_call.1} parent=23 // pred_check_branch
          %230 = sbr.rel (%p228) target = $region32
        $region31: #{tpu_custom_call.1} parent=23 // pred_region
          %vm231 = vcmask 7168
          %232 = vst.msk [vmem:[%s217] sm:$0xff] %vm231, 0.0
          %233 = vst.msk [vmem:[%s217 + $0x8] sm:$0xff] %vm231, 0.0
          %234 = vst.msk [vmem:[%s226] sm:$0xff] %vm231, 0.0
          %235 = vst.msk [vmem:[%s226 + $0x8] sm:$0xff] %vm231, 0.0
        $region32: #{tpu_custom_call.1} parent=23 // pred_fallthru
          _
        %v236 = vld [vmem:[%s172] sm:$0xff]
        %v237 = vld [vmem:[%s172 + $0x8] sm:$0xff]
        %v238 = vld [vmem:[%s172 + $0x10] sm:$0xff]
        %v239 = vld [vmem:[%s172 + $0x18] sm:$0xff]
        %v240 = vld [vmem:[%s172 + $0x20] sm:$0xff]
        %v241 = vld [vmem:[%s172 + $0x28] sm:$0xff]
        %v242 = vld [vmem:[%s172 + $0x30] sm:$0xff]
        %v243 = vld [vmem:[%s172 + $0x38] sm:$0xff]
        %v244 = vld [vmem:[%s172 + $0x40] sm:$0xff]
        %v245 = vld [vmem:[%s172 + $0x48] sm:$0xff]
        %v246 = vld [vmem:[%s172 + $0x50] sm:$0xff]
        %v247 = vld [vmem:[%s172 + $0x58] sm:$0xff]
        %v248 = vld [vmem:[%s172 + $0x60] sm:$0xff]
        %v249 = vld [vmem:[%s172 + $0x68] sm:$0xff]
        %v250 = vld [vmem:[%s172 + $0x70] sm:$0xff]
        %v251 = vld [vmem:[%s172 + $0x78] sm:$0xff]
        %v252 = vld [vmem:[%s217] sm:$0xff]
        %v253 = vld [vmem:[%s217 + $0x8] sm:$0xff]
        %254 = vmatpush.msra.mxu0 1.0
        %255 = vmatpush.msra.mxu0 1.0
        %256 = vmatpush.msra.mxu0 1.0
        %257 = vmatpush.msra.mxu0 1.0
        %258 = vmatpush.msra.mxu0 1.0
        %259 = vmatpush.msra.mxu0 1.0
        %260 = vmatpush.msra.mxu0 1.0
        %261 = vmatpush.msra.mxu0 1.0
        %262 = vmatpush.msra.mxu0 1.0
        %263 = vmatpush.msra.mxu0 1.0
        %264 = vmatpush.msra.mxu0 1.0
        %265 = vmatpush.msra.mxu0 1.0
        %266 = vmatpush.msra.mxu0 1.0
        %267 = vmatpush.msra.mxu0 1.0
        %268 = vmatpush.msra.mxu0 1.0
        %269 = vmatpush.msra.mxu0 1.0
        %270 = vmatmul.f32.gmra.mxu0 %v236
        %v271 = vpop.f32.mrf.mxu0
        %v272 = vadd.f32 0.0, %v271
        %273 = vmatmul.f32.gmra.mxu0 %v244
        %v274 = vpop.f32.mrf.mxu0
        %v275 = vadd.f32 0.0, %v274
        %276 = vdwg.mxu0
        %277 = vmatpush.msra.mxu0 1.0
        %278 = vmatpush.msra.mxu0 1.0
        %279 = vmatpush.msra.mxu0 1.0
        %280 = vmatpush.msra.mxu0 1.0
        %281 = vmatpush.msra.mxu0 1.0
        %282 = vmatpush.msra.mxu0 1.0
        %283 = vmatpush.msra.mxu0 1.0
        %284 = vmatpush.msra.mxu0 1.0
        %285 = vmatpush.msra.mxu0 1.0
        %286 = vmatpush.msra.mxu0 1.0
        %287 = vmatpush.msra.mxu0 1.0
        %288 = vmatpush.msra.mxu0 1.0
        %289 = vmatpush.msra.mxu0 1.0
        %290 = vmatpush.msra.mxu0 1.0
        %291 = vmatpush.msra.mxu0 1.0
        %292 = vmatpush.msra.mxu0 1.0
        %293 = vmatmul.f32.gmra.mxu0 %v237
        %v294 = vpop.f32.mrf.mxu0
        %v295 = vadd.f32 %v272, %v294
        %296 = vmatmul.f32.gmra.mxu0 %v245
        %v297 = vpop.f32.mrf.mxu0
        %v298 = vadd.f32 %v275, %v297
        %299 = vdwg.mxu0
        %300 = vmatpush.msra.mxu0 1.0
        %301 = vmatpush.msra.mxu0 1.0
        %302 = vmatpush.msra.mxu0 1.0
        %303 = vmatpush.msra.mxu0 1.0
        %304 = vmatpush.msra.mxu0 1.0
        %305 = vmatpush.msra.mxu0 1.0
        %306 = vmatpush.msra.mxu0 1.0
        %307 = vmatpush.msra.mxu0 1.0
        %308 = vmatpush.msra.mxu0 1.0
        %309 = vmatpush.msra.mxu0 1.0
        %310 = vmatpush.msra.mxu0 1.0
        %311 = vmatpush.msra.mxu0 1.0
        %312 = vmatpush.msra.mxu0 1.0
        %313 = vmatpush.msra.mxu0 1.0
        %314 = vmatpush.msra.mxu0 1.0
        %315 = vmatpush.msra.mxu0 1.0
        %316 = vmatmul.f32.gmra.mxu0 %v238
        %v317 = vpop.f32.mrf.mxu0
        %v318 = vadd.f32 %v295, %v317
        %319 = vmatmul.f32.gmra.mxu0 %v246
        %v320 = vpop.f32.mrf.mxu0
        %v321 = vadd.f32 %v298, %v320
        %322 = vdwg.mxu0
        %323 = vmatpush.msra.mxu0 1.0
        %324 = vmatpush.msra.mxu0 1.0
        %325 = vmatpush.msra.mxu0 1.0
        %326 = vmatpush.msra.mxu0 1.0
        %327 = vmatpush.msra.mxu0 1.0
        %328 = vmatpush.msra.mxu0 1.0
        %329 = vmatpush.msra.mxu0 1.0
        %330 = vmatpush.msra.mxu0 1.0
        %331 = vmatpush.msra.mxu0 1.0
        %332 = vmatpush.msra.mxu0 1.0
        %333 = vmatpush.msra.mxu0 1.0
        %334 = vmatpush.msra.mxu0 1.0
        %335 = vmatpush.msra.mxu0 1.0
        %336 = vmatpush.msra.mxu0 1.0
        %337 = vmatpush.msra.mxu0 1.0
        %338 = vmatpush.msra.mxu0 1.0
        %339 = vmatmul.f32.gmra.mxu0 %v239
        %v340 = vpop.f32.mrf.mxu0
        %v341 = vadd.f32 %v318, %v340
        %342 = vmatmul.f32.gmra.mxu0 %v247
        %v343 = vpop.f32.mrf.mxu0
        %v344 = vadd.f32 %v321, %v343
        %345 = vdwg.mxu0
        %346 = vmatpush.msra.mxu0 1.0
        %347 = vmatpush.msra.mxu0 1.0
        %348 = vmatpush.msra.mxu0 1.0
        %349 = vmatpush.msra.mxu0 1.0
        %350 = vmatpush.msra.mxu0 1.0
        %351 = vmatpush.msra.mxu0 1.0
        %352 = vmatpush.msra.mxu0 1.0
        %353 = vmatpush.msra.mxu0 1.0
        %354 = vmatpush.msra.mxu0 1.0
        %355 = vmatpush.msra.mxu0 1.0
        %356 = vmatpush.msra.mxu0 1.0
        %357 = vmatpush.msra.mxu0 1.0
        %358 = vmatpush.msra.mxu0 1.0
        %359 = vmatpush.msra.mxu0 1.0
        %360 = vmatpush.msra.mxu0 1.0
        %361 = vmatpush.msra.mxu0 1.0
        %362 = vmatmul.f32.gmra.mxu0 %v240
        %v363 = vpop.f32.mrf.mxu0
        %v364 = vadd.f32 %v341, %v363
        %365 = vmatmul.f32.gmra.mxu0 %v248
        %v366 = vpop.f32.mrf.mxu0
        %v367 = vadd.f32 %v344, %v366
        %368 = vdwg.mxu0
        %369 = vmatpush.msra.mxu0 1.0
        %370 = vmatpush.msra.mxu0 1.0
        %371 = vmatpush.msra.mxu0 1.0
        %372 = vmatpush.msra.mxu0 1.0
        %373 = vmatpush.msra.mxu0 1.0
        %374 = vmatpush.msra.mxu0 1.0
        %375 = vmatpush.msra.mxu0 1.0
        %376 = vmatpush.msra.mxu0 1.0
        %377 = vmatpush.msra.mxu0 1.0
        %378 = vmatpush.msra.mxu0 1.0
        %379 = vmatpush.msra.mxu0 1.0
        %380 = vmatpush.msra.mxu0 1.0
        %381 = vmatpush.msra.mxu0 1.0
        %382 = vmatpush.msra.mxu0 1.0
        %383 = vmatpush.msra.mxu0 1.0
        %384 = vmatpush.msra.mxu0 1.0
        %385 = vmatmul.f32.gmra.mxu0 %v241
        %v386 = vpop.f32.mrf.mxu0
        %v387 = vadd.f32 %v364, %v386
        %388 = vmatmul.f32.gmra.mxu0 %v249
        %v389 = vpop.f32.mrf.mxu0
        %v390 = vadd.f32 %v367, %v389
        %391 = vdwg.mxu0
        %392 = vmatpush.msra.mxu0 1.0
        %393 = vmatpush.msra.mxu0 1.0
        %394 = vmatpush.msra.mxu0 1.0
        %395 = vmatpush.msra.mxu0 1.0
        %396 = vmatpush.msra.mxu0 1.0
        %397 = vmatpush.msra.mxu0 1.0
        %398 = vmatpush.msra.mxu0 1.0
        %399 = vmatpush.msra.mxu0 1.0
        %400 = vmatpush.msra.mxu0 1.0
        %401 = vmatpush.msra.mxu0 1.0
        %402 = vmatpush.msra.mxu0 1.0
        %403 = vmatpush.msra.mxu0 1.0
        %404 = vmatpush.msra.mxu0 1.0
        %405 = vmatpush.msra.mxu0 1.0
        %406 = vmatpush.msra.mxu0 1.0
        %407 = vmatpush.msra.mxu0 1.0
        %408 = vmatmul.f32.gmra.mxu0 %v242
        %v409 = vpop.f32.mrf.mxu0
        %v410 = vadd.f32 %v387, %v409
        %411 = vmatmul.f32.gmra.mxu0 %v250
        %v412 = vpop.f32.mrf.mxu0
        %v413 = vadd.f32 %v390, %v412
        %414 = vdwg.mxu0
        %415 = vmatpush.msra.mxu0 1.0
        %416 = vmatpush.msra.mxu0 1.0
        %417 = vmatpush.msra.mxu0 1.0
        %418 = vmatpush.msra.mxu0 1.0
        %419 = vmatpush.msra.mxu0 1.0
        %420 = vmatpush.msra.mxu0 1.0
        %421 = vmatpush.msra.mxu0 1.0
        %422 = vmatpush.msra.mxu0 1.0
        %423 = vmatpush.msra.mxu0 1.0
        %424 = vmatpush.msra.mxu0 1.0
        %425 = vmatpush.msra.mxu0 1.0
        %426 = vmatpush.msra.mxu0 1.0
        %427 = vmatpush.msra.mxu0 1.0
        %428 = vmatpush.msra.mxu0 1.0
        %429 = vmatpush.msra.mxu0 1.0
        %430 = vmatpush.msra.mxu0 1.0
        %431 = vmatmul.f32.gmra.mxu0 %v243
        %v432 = vpop.f32.mrf.mxu0
        %v433 = vadd.f32 %v410, %v432
        %434 = vmatmul.f32.gmra.mxu0 %v251
        %v435 = vpop.f32.mrf.mxu0
        %v436 = vadd.f32 %v413, %v435
        %437 = vdwg.mxu0
        %v438 = vadd.f32 %v252, %v433
        %v439 = vadd.f32 %v253, %v436
        %vm440 = vcmask 7168
        %441 = vst.msk [vmem:[%s217] sm:$0xff] %vm440, %v438
        %442 = vst.msk [vmem:[%s217 + $0x8] sm:$0xff] %vm440, %v439
        %v443 = vld [vmem:[%s226] sm:$0xff]
        %v444 = vld [vmem:[%s226 + $0x8] sm:$0xff]
        %v445 = vmul.f32 %v236, %v236
        %v446 = vmul.f32 %v237, %v237
        %v447 = vmul.f32 %v238, %v238
        %v448 = vmul.f32 %v239, %v239
        %v449 = vmul.f32 %v240, %v240
        %v450 = vmul.f32 %v241, %v241
        %v451 = vmul.f32 %v242, %v242
        %v452 = vmul.f32 %v243, %v243
        %v453 = vmul.f32 %v244, %v244
        %v454 = vmul.f32 %v245, %v245
        %v455 = vmul.f32 %v246, %v246
        %v456 = vmul.f32 %v247, %v247
        %v457 = vmul.f32 %v248, %v248
        %v458 = vmul.f32 %v249, %v249
        %v459 = vmul.f32 %v250, %v250
        %v460 = vmul.f32 %v251, %v251
        %461 = vmatpush.msra.mxu0 1.0
        %462 = vmatpush.msra.mxu0 1.0
        %463 = vmatpush.msra.mxu0 1.0
        %464 = vmatpush.msra.mxu0 1.0
        %465 = vmatpush.msra.mxu0 1.0
        %466 = vmatpush.msra.mxu0 1.0
        %467 = vmatpush.msra.mxu0 1.0
        %468 = vmatpush.msra.mxu0 1.0
        %469 = vmatpush.msra.mxu0 1.0
        %470 = vmatpush.msra.mxu0 1.0
        %471 = vmatpush.msra.mxu0 1.0
        %472 = vmatpush.msra.mxu0 1.0
        %473 = vmatpush.msra.mxu0 1.0
        %474 = vmatpush.msra.mxu0 1.0
        %475 = vmatpush.msra.mxu0 1.0
        %476 = vmatpush.msra.mxu0 1.0
        %477 = vmatmul.f32.gmra.mxu0 %v445
        %v478 = vpop.f32.mrf.mxu0
        %v479 = vadd.f32 0.0, %v478
        %480 = vmatmul.f32.gmra.mxu0 %v453
        %v481 = vpop.f32.mrf.mxu0
        %v482 = vadd.f32 0.0, %v481
        %483 = vdwg.mxu0
        %484 = vmatpush.msra.mxu0 1.0
        %485 = vmatpush.msra.mxu0 1.0
        %486 = vmatpush.msra.mxu0 1.0
        %487 = vmatpush.msra.mxu0 1.0
        %488 = vmatpush.msra.mxu0 1.0
        %489 = vmatpush.msra.mxu0 1.0
        %490 = vmatpush.msra.mxu0 1.0
        %491 = vmatpush.msra.mxu0 1.0
        %492 = vmatpush.msra.mxu0 1.0
        %493 = vmatpush.msra.mxu0 1.0
        %494 = vmatpush.msra.mxu0 1.0
        %495 = vmatpush.msra.mxu0 1.0
        %496 = vmatpush.msra.mxu0 1.0
        %497 = vmatpush.msra.mxu0 1.0
        %498 = vmatpush.msra.mxu0 1.0
        %499 = vmatpush.msra.mxu0 1.0
        %500 = vmatmul.f32.gmra.mxu0 %v446
        %v501 = vpop.f32.mrf.mxu0
        %v502 = vadd.f32 %v479, %v501
        %503 = vmatmul.f32.gmra.mxu0 %v454
        %v504 = vpop.f32.mrf.mxu0
        %v505 = vadd.f32 %v482, %v504
        %506 = vdwg.mxu0
        %507 = vmatpush.msra.mxu0 1.0
        %508 = vmatpush.msra.mxu0 1.0
        %509 = vmatpush.msra.mxu0 1.0
        %510 = vmatpush.msra.mxu0 1.0
        %511 = vmatpush.msra.mxu0 1.0
        %512 = vmatpush.msra.mxu0 1.0
        %513 = vmatpush.msra.mxu0 1.0
        %514 = vmatpush.msra.mxu0 1.0
        %515 = vmatpush.msra.mxu0 1.0
        %516 = vmatpush.msra.mxu0 1.0
        %517 = vmatpush.msra.mxu0 1.0
        %518 = vmatpush.msra.mxu0 1.0
        %519 = vmatpush.msra.mxu0 1.0
        %520 = vmatpush.msra.mxu0 1.0
        %521 = vmatpush.msra.mxu0 1.0
        %522 = vmatpush.msra.mxu0 1.0
        %523 = vmatmul.f32.gmra.mxu0 %v447
        %v524 = vpop.f32.mrf.mxu0
        %v525 = vadd.f32 %v502, %v524
        %526 = vmatmul.f32.gmra.mxu0 %v455
        %v527 = vpop.f32.mrf.mxu0
        %v528 = vadd.f32 %v505, %v527
        %529 = vdwg.mxu0
        %530 = vmatpush.msra.mxu0 1.0
        %531 = vmatpush.msra.mxu0 1.0
        %532 = vmatpush.msra.mxu0 1.0
        %533 = vmatpush.msra.mxu0 1.0
        %534 = vmatpush.msra.mxu0 1.0
        %535 = vmatpush.msra.mxu0 1.0
        %536 = vmatpush.msra.mxu0 1.0
        %537 = vmatpush.msra.mxu0 1.0
        %538 = vmatpush.msra.mxu0 1.0
        %539 = vmatpush.msra.mxu0 1.0
        %540 = vmatpush.msra.mxu0 1.0
        %541 = vmatpush.msra.mxu0 1.0
        %542 = vmatpush.msra.mxu0 1.0
        %543 = vmatpush.msra.mxu0 1.0
        %544 = vmatpush.msra.mxu0 1.0
        %545 = vmatpush.msra.mxu0 1.0
        %546 = vmatmul.f32.gmra.mxu0 %v448
        %v547 = vpop.f32.mrf.mxu0
        %v548 = vadd.f32 %v525, %v547
        %549 = vmatmul.f32.gmra.mxu0 %v456
        %v550 = vpop.f32.mrf.mxu0
        %v551 = vadd.f32 %v528, %v550
        %552 = vdwg.mxu0
        %553 = vmatpush.msra.mxu0 1.0
        %554 = vmatpush.msra.mxu0 1.0
        %555 = vmatpush.msra.mxu0 1.0
        %556 = vmatpush.msra.mxu0 1.0
        %557 = vmatpush.msra.mxu0 1.0
        %558 = vmatpush.msra.mxu0 1.0
        %559 = vmatpush.msra.mxu0 1.0
        %560 = vmatpush.msra.mxu0 1.0
        %561 = vmatpush.msra.mxu0 1.0
        %562 = vmatpush.msra.mxu0 1.0
        %563 = vmatpush.msra.mxu0 1.0
        %564 = vmatpush.msra.mxu0 1.0
        %565 = vmatpush.msra.mxu0 1.0
        %566 = vmatpush.msra.mxu0 1.0
        %567 = vmatpush.msra.mxu0 1.0
        %568 = vmatpush.msra.mxu0 1.0
        %569 = vmatmul.f32.gmra.mxu0 %v449
        %v570 = vpop.f32.mrf.mxu0
        %v571 = vadd.f32 %v548, %v570
        %572 = vmatmul.f32.gmra.mxu0 %v457
        %v573 = vpop.f32.mrf.mxu0
        %v574 = vadd.f32 %v551, %v573
        %575 = vdwg.mxu0
        %576 = vmatpush.msra.mxu0 1.0
        %577 = vmatpush.msra.mxu0 1.0
        %578 = vmatpush.msra.mxu0 1.0
        %579 = vmatpush.msra.mxu0 1.0
        %580 = vmatpush.msra.mxu0 1.0
        %581 = vmatpush.msra.mxu0 1.0
        %582 = vmatpush.msra.mxu0 1.0
        %583 = vmatpush.msra.mxu0 1.0
        %584 = vmatpush.msra.mxu0 1.0
        %585 = vmatpush.msra.mxu0 1.0
        %586 = vmatpush.msra.mxu0 1.0
        %587 = vmatpush.msra.mxu0 1.0
        %588 = vmatpush.msra.mxu0 1.0
        %589 = vmatpush.msra.mxu0 1.0
        %590 = vmatpush.msra.mxu0 1.0
        %591 = vmatpush.msra.mxu0 1.0
        %592 = vmatmul.f32.gmra.mxu0 %v450
        %v593 = vpop.f32.mrf.mxu0
        %v594 = vadd.f32 %v571, %v593
        %595 = vmatmul.f32.gmra.mxu0 %v458
        %v596 = vpop.f32.mrf.mxu0
        %v597 = vadd.f32 %v574, %v596
        %598 = vdwg.mxu0
        %599 = vmatpush.msra.mxu0 1.0
        %600 = vmatpush.msra.mxu0 1.0
        %601 = vmatpush.msra.mxu0 1.0
        %602 = vmatpush.msra.mxu0 1.0
        %603 = vmatpush.msra.mxu0 1.0
        %604 = vmatpush.msra.mxu0 1.0
        %605 = vmatpush.msra.mxu0 1.0
        %606 = vmatpush.msra.mxu0 1.0
        %607 = vmatpush.msra.mxu0 1.0
        %608 = vmatpush.msra.mxu0 1.0
        %609 = vmatpush.msra.mxu0 1.0
        %610 = vmatpush.msra.mxu0 1.0
        %611 = vmatpush.msra.mxu0 1.0
        %612 = vmatpush.msra.mxu0 1.0
        %613 = vmatpush.msra.mxu0 1.0
        %614 = vmatpush.msra.mxu0 1.0
        %615 = vmatmul.f32.gmra.mxu0 %v451
        %v616 = vpop.f32.mrf.mxu0
        %v617 = vadd.f32 %v594, %v616
        %618 = vmatmul.f32.gmra.mxu0 %v459
        %v619 = vpop.f32.mrf.mxu0
        %v620 = vadd.f32 %v597, %v619
        %621 = vdwg.mxu0
        %622 = vmatpush.msra.mxu0 1.0
        %623 = vmatpush.msra.mxu0 1.0
        %624 = vmatpush.msra.mxu0 1.0
        %625 = vmatpush.msra.mxu0 1.0
        %626 = vmatpush.msra.mxu0 1.0
        %627 = vmatpush.msra.mxu0 1.0
        %628 = vmatpush.msra.mxu0 1.0
        %629 = vmatpush.msra.mxu0 1.0
        %630 = vmatpush.msra.mxu0 1.0
        %631 = vmatpush.msra.mxu0 1.0
        %632 = vmatpush.msra.mxu0 1.0
        %633 = vmatpush.msra.mxu0 1.0
        %634 = vmatpush.msra.mxu0 1.0
        %635 = vmatpush.msra.mxu0 1.0
        %636 = vmatpush.msra.mxu0 1.0
        %637 = vmatpush.msra.mxu0 1.0
        %638 = vmatmul.f32.gmra.mxu0 %v452
        %v639 = vpop.f32.mrf.mxu0
        %v640 = vadd.f32 %v617, %v639
        %641 = vmatmul.f32.gmra.mxu0 %v460
        %v642 = vpop.f32.mrf.mxu0
        %v643 = vadd.f32 %v620, %v642
        %644 = vdwg.mxu0
        %v645 = vadd.f32 %v443, %v640
        %v646 = vadd.f32 %v444, %v643
        %647 = vst.msk [vmem:[%s226] sm:$0xff] %vm440, %v645
        %648 = vst.msk [vmem:[%s226 + $0x8] sm:$0xff] %vm440, %v646
        %p649 = scmp.lt.s32.totalorder %s22, 1
        %s650 = scalar_select %p649, %s22, 1
        %p651 = scmp.lt.s32.totalorder %s23, 0
        %s652 = scalar_select %p651, %s23, 0
        %s653 = smul.addr %s652, 2
        %s654 = smul.addr %s650, 2
        %s655 = sadd.s32 %s653, %s654
        %s656 = smul.addr %s655, 8
        %s657 = scalar_lea.vmem %s1, %s656
        %p658 = scmp.lt.s32.totalorder %s22, 1
        %s659 = scalar_select %p658, %s22, 1
        %p660 = scmp.lt.s32.totalorder %s23, 0
        %s661 = scalar_select %p660, %s23, 0
        %s662 = smul.addr %s661, 2
        %s663 = smul.addr %s659, 2
        %s664 = sadd.s32 %s662, %s663
        %s665 = smul.addr %s664, 8
        %s666 = scalar_lea.vmem %s2, %s665
        // Predicated region
        $region33: #{tpu_custom_call.1} parent=23 // pred_check
          %p667 = pneg %p86
        $region34: #{tpu_custom_call.1} parent=23 // pred_check_branch
          %669 = sbr.rel (%p667) target = $region36
        $region35: #{tpu_custom_call.1} parent=23 // pred_region
          _
        $region36: #{tpu_custom_call.1} parent=23 // pred_fallthru
          _
        // Predicated region
        $region37: #{tpu_custom_call.1} parent=23 // pred_check
          %p670 = pneg %p114
        $region38: #{tpu_custom_call.1} parent=23 // pred_check_branch
          %672 = sbr.rel (%p670) target = $region40
        $region39: #{tpu_custom_call.1} parent=23 // pred_region
          _
        $region40: #{tpu_custom_call.1} parent=23 // pred_fallthru
          _
      $region24: #{tpu_custom_call.1} parent=5 // pred_fallthru
        _
      %p673 = scmp.le.s32.totalorder 2, %s12
      // Predicated region
      $region41: #{tpu_custom_call.1} parent=5 // pred_check
        %p674 = pneg %p673
      $region42: #{tpu_custom_call.1} parent=5 // pred_check_branch
        %676 = sbr.rel (%p674) target = $region44
      $region43: #{tpu_custom_call.1} parent=5 // pred_region
        %s677 = ssub.s32 %s12, 2
        // Predicated region
        $region45: #{tpu_custom_call.1} parent=43 // pred_check
          %p678 = pneg %p92
        $region46: #{tpu_custom_call.1} parent=43 // pred_check_branch
          %680 = sbr.rel (%p678) target = $region48
        $region47: #{tpu_custom_call.1} parent=43 // pred_region
          %p681 = scmp.lt.s32.totalorder %s25, 1
          %s682 = scalar_select %p681, %s25, 1
          %p683 = scmp.lt.s32.totalorder %s26, 0
          %s684 = scalar_select %p683, %s26, 0
          %s685 = smul.addr %s684, 2
          %s686 = smul.addr %s682, 2
          %s687 = sadd.s32 %s685, %s686
          %s688 = smul.addr %s687, 8
          %s689 = scalar_lea.vmem %s1, %s688
        $region48: #{tpu_custom_call.1} parent=43 // pred_fallthru
          _
        // Predicated region
        $region49: #{tpu_custom_call.1} parent=43 // pred_check
          %p690 = pneg %p120
        $region50: #{tpu_custom_call.1} parent=43 // pred_check_branch
          %692 = sbr.rel (%p690) target = $region52
        $region51: #{tpu_custom_call.1} parent=43 // pred_region
          %p693 = scmp.lt.s32.totalorder %s25, 1
          %s694 = scalar_select %p693, %s25, 1
          %p695 = scmp.lt.s32.totalorder %s26, 0
          %s696 = scalar_select %p695, %s26, 0
          %s697 = smul.addr %s696, 2
          %s698 = smul.addr %s694, 2
          %s699 = sadd.s32 %s697, %s698
          %s700 = smul.addr %s699, 8
          %s701 = scalar_lea.vmem %s2, %s700
        $region52: #{tpu_custom_call.1} parent=43 // pred_fallthru
          _
      $region44: #{tpu_custom_call.1} parent=5 // pred_fallthru
        _
    $region6: #{tpu_custom_call.1} parent=1 // loop_footer
      %s16 = sadd.s32 1, %s12
    $region7: #{tpu_custom_call.1} parent=1 // loop_footer_branch
      %11 = sbr.rel target = $region3
    $region8: #{tpu_custom_call.1} parent=1 // loop_exit
      _
    %702 = vsyncpa [#allocation3], 1
    %s703 = scalar_lea.sflag [#allocation3], 1
    %704 = vsyncpa %s703, 1

</llo_original>
